<compile_context>
chip_gen: v7x
topology: tpu7x:2x2x1
jax: 0.10.0
libtpu: 0.0.40
codegen_flags: <defaults>
</compile_context>

<pallas_src>
from typing import NamedTuple, Optional

import jax
import jax.numpy as jnp
from jax.experimental import pallas as pl
from jax.experimental.pallas import tpu as pltpu


def _round_up(x: int, m: int) -> int:
    return ((x + m - 1) // m) * m


# ---------------------------------------------------------------------------
# Hardware introspection (generation-aware tile / VMEM choices).
# ---------------------------------------------------------------------------

def _vmem_capacity_bytes() -> int:
    try:
        cap = int(pltpu.get_tpu_info().vmem_capacity_bytes)
        if cap > 0:
            return cap
    except Exception:
        pass
    return 64 << 20  # conservative fallback (v7x has the smallest VMEM)


def _tpu_generation() -> str:
    try:
        kind = jax.devices()[0].device_kind.lower()
    except Exception:
        kind = ""
    if "v5 lite" in kind or "v5e" in kind or "v5litepod" in kind:
        return "v5e"
    if "v6" in kind:
        return "v6e"
    if "v7" in kind:
        return "v7x"
    return "unknown"


# ---------------------------------------------------------------------------
# Kernel.
# ---------------------------------------------------------------------------

def _ffn_kernel(x_ref, w1_ref, b1_ref, w2_ref, b2_ref, o_ref, acc_ref):
    # x_ref:  (tm, dim_p)       token tile (compute dtype)
    # w1_ref: (dim_p, th)       hidden-chunk of W1
    # b1_ref: (1, th)           hidden-chunk of b1 (f32)
    # w2_ref: (th, dim_p)       hidden-chunk of W2 rows
    # b2_ref: (1, dim_p)        b2 (f32)
    # o_ref:  (tm, dim_p)       output tile (written once, on last chunk)
    # acc_ref:(tm, dim_p) f32   accumulator across hidden chunks
    j = pl.program_id(1)

    @pl.when(j == 0)
    def _():
        acc_ref[...] = jnp.zeros_like(acc_ref)

    # linear_1 chunk: (tm, th), f32 accumulation on the MXU.
    h = jnp.dot(x_ref[...], w1_ref[...], preferred_element_type=jnp.float32)
    h = h + b1_ref[...]
    # SiLU in f32 (exp lowers to the EUP); cast back to the MXU operand dtype
    # only for the second matmul.
    h = h * jax.nn.sigmoid(h)
    acc_ref[...] += jnp.dot(h.astype(w2_ref.dtype), w2_ref[...],
                            preferred_element_type=jnp.float32)

    @pl.when(j == pl.num_programs(1) - 1)
    def _():
        o_ref[...] = (acc_ref[...] + b2_ref[...]).astype(o_ref.dtype)


# ---------------------------------------------------------------------------
# One-time parameter preparation (hoisted pad / cast).
# ---------------------------------------------------------------------------

class FFNParams(NamedTuple):
    w1: jax.Array    # (dim_p, hidden_p), compute dtype, stored as [in, out]
    b1: jax.Array    # (1, hidden_p), f32
    w2: jax.Array    # (hidden_p, dim_p), compute dtype
    b2: jax.Array    # (1, dim_p), f32
    dim: int
    hidden: int
    th: int


def prepare_ffn_params(w1, b1, w2, b2, *, th: int = 512,
                       compute_dtype=None) -> FFNParams:
    """One-time pad/cast of FFN weights (hoisted out of the per-call path).

    w1: [dim, hidden]  (pre-transposed vs. nn.Linear's [hidden, dim])
    b1: [hidden]
    w2: [hidden, dim]
    b2: [dim]
    compute_dtype: MXU operand dtype.  None => bf16 when weights are f32
                   (accumulation / SiLU / bias math stay f32 either way).
    """
    dim, hidden = w1.shape
    assert w2.shape == (hidden, dim)

    if compute_dtype is None:
        compute_dtype = jnp.bfloat16 if w1.dtype == jnp.float32 else w1.dtype

    dim_p = _round_up(dim, 128)
    th = max(128, _round_up(min(th, _round_up(hidden, 128)), 128))
    hidden_p = _round_up(_round_up(hidden, 128), th)

    w1p = jnp.pad(w1.astype(compute_dtype),
                  ((0, dim_p - dim), (0, hidden_p - hidden)))
    w2p = jnp.pad(w2.astype(compute_dtype),
                  ((0, hidden_p - hidden), (0, dim_p - dim)))
    b1p = jnp.pad(b1.astype(jnp.float32), (0, hidden_p - hidden)).reshape(1, hidden_p)
    b2p = jnp.pad(b2.astype(jnp.float32), (0, dim_p - dim)).reshape(1, dim_p)
    return FFNParams(w1p, b1p, w2p, b2p, dim, hidden, th)


# ---------------------------------------------------------------------------
# Tile selection.
# ---------------------------------------------------------------------------

def _working_set_bytes(tm, th, dim_p, cbytes, wbytes, obytes, wbuf):
    x_tile = 2 * tm * dim_p * cbytes                      # double-buffered x tile
    w_chunks = wbuf * th * (2 * dim_p * wbytes + 4)       # W1 + W2 chunks + b1
    b2 = 2 * dim_p * 4
    out_tile = 2 * tm * dim_p * obytes
    acc = tm * dim_p * 4                                  # f32 accumulator
    h = tm * th * (4 + wbytes)                            # f32 SiLU interm + cast copy
    return x_tile + w_chunks + b2 + out_tile + acc + h


def _pick_tm(M, dim_p, th, cbytes, wbytes, obytes, gen, budget):
    # Generation-aware defaults: keep arithmetic intensity (~tm FLOPs per
    # weight byte) above each chip's compute/HBM crossover.
    if gen == "v6e":
        tm = 768
    elif gen == "v7x":
        tm = 512 if (wbytes <= 2 and dim_p <= 4096) else 256
    elif gen == "v5e":
        tm = 256
    else:
        tm = 512
    tm = max(8, min(_round_up(tm, 8), _round_up(M, 8)))

    wbuf = 3 if gen == "v5e" else 2   # v5e: deeper weight-chunk pipelining
    # Shrink the token tile until the working set fits the VMEM budget.
    while tm > 8 and _working_set_bytes(tm, th, dim_p, cbytes, wbytes,
                                        obytes, wbuf) > budget:
        tm = max(8, _round_up(tm // 2, 8))
    if wbuf > 2 and _working_set_bytes(tm, th, dim_p, cbytes, wbytes,
                                       obytes, wbuf) > budget:
        wbuf = 2
    return tm, wbuf


# ---------------------------------------------------------------------------
# Wrapper.
# ---------------------------------------------------------------------------

def ffn_pallas(x, params: FFNParams, *, tm: Optional[int] = None):
    """Fused FFN forward: x @ W1 + b1 -> SiLU -> @ W2 + b2.

    x: [..., dim]; params from prepare_ffn_params().  Output dtype == x.dtype.
    """
    orig_shape = x.shape
    out_dtype = x.dtype
    dim, hidden, th = params.dim, params.hidden, params.th
    dim_p = params.b2.shape[1]
    hidden_p = params.b1.shape[1]
    compute_dtype = params.w1.dtype

    x2d = x.reshape(-1, dim).astype(compute_dtype)
    M = x2d.shape[0]

    cbytes = jnp.dtype(compute_dtype).itemsize
    wbytes = jnp.dtype(params.w1.dtype).itemsize
    obytes = jnp.dtype(out_dtype).itemsize

    gen = _tpu_generation()
    budget = int(_vmem_capacity_bytes() * 0.85)

    if tm is None:
        tm, wbuf = _pick_tm(M, dim_p, th, cbytes, wbytes, obytes, gen, budget)
    else:
        tm = max(8, min(_round_up(tm, 8), _round_up(M, 8)))
        wbuf = 3 if gen == "v5e" else 2

    M_p = _round_up(M, tm)
    xp = jnp.pad(x2d, ((0, M_p - M), (0, dim_p - dim)))

    ws = _working_set_bytes(tm, th, dim_p, cbytes, wbytes, obytes, wbuf)
    vmem_limit = int(min(max(int(ws * 1.25) + (2 << 20), 16 << 20), budget))

    grid = (M_p // tm, hidden_p // th)

    def _wspec(shape, index_map):
        # Deeper buffering on the streamed weight chunks (v5e); fall back to
        # the default double-buffering if pipeline_mode isn't supported.
        if wbuf > 2:
            try:
                return pl.BlockSpec(shape, index_map,
                                    pipeline_mode=pl.Buffered(wbuf))
            except TypeError:
                pass
        return pl.BlockSpec(shape, index_map)

    out = pl.pallas_call(
        _ffn_kernel,
        out_shape=jax.ShapeDtypeStruct((M_p, dim_p), out_dtype),
        grid_spec=pltpu.PrefetchScalarGridSpec(
            num_scalar_prefetch=0,
            grid=grid,
            in_specs=[
                pl.BlockSpec((tm, dim_p), lambda i, j: (i, 0)),      # x tile
                _wspec((dim_p, th), lambda i, j: (0, j)),            # W1 chunk
                pl.BlockSpec((1, th), lambda i, j: (0, j)),          # b1 chunk
                _wspec((th, dim_p), lambda i, j: (j, 0)),            # W2 chunk
                pl.BlockSpec((1, dim_p), lambda i, j: (0, 0)),       # b2
            ],
            out_specs=pl.BlockSpec((tm, dim_p), lambda i, j: (i, 0)),
            scratch_shapes=[pltpu.VMEM((tm, dim_p), jnp.float32)],
        ),
        compiler_params=pltpu.CompilerParams(
            dimension_semantics=("parallel", "arbitrary"),
            vmem_limit_bytes=vmem_limit,
        ),
    )(xp, params.w1, params.b1, params.w2, params.b2)

    return out[:M, :dim].reshape(orig_shape)


# ---------------------------------------------------------------------------
# Init / reference / self-test.
# ---------------------------------------------------------------------------

def init_ffn_params(key, dim, dim_hidden, dtype=jnp.float32):
    """Deterministic init mirroring nn.Linear's U(-1/sqrt(fan_in), 1/sqrt(fan_in))."""
    k1, k2, k3, k4 = jax.random.split(key, 4)
    s1 = 1.0 / jnp.sqrt(dim)
    s2 = 1.0 / jnp.sqrt(dim_hidden)
    # stored pre-transposed: [in, out]
    w1 = jax.random.uniform(k1, (dim, dim_hidden), dtype, minval=-s1, maxval=s1)
    b1 = jax.random.uniform(k2, (dim_hidden,), dtype, minval=-s1, maxval=s1)
    w2 = jax.random.uniform(k3, (dim_hidden, dim), dtype, minval=-s2, maxval=s2)
    b2 = jax.random.uniform(k4, (dim,), dtype, minval=-s2, maxval=s2)
    return w1, b1, w2, b2


def _ffn_ref(x, w1, b1, w2, b2):
    h = x @ w1 + b1
    h = h * jax.nn.sigmoid(h)
    return h @ w2 + b2


if __name__ == "__main__":
    key = jax.random.PRNGKey(0)
    batch, seq, dim, dim_hidden = 2, 8, 32, 64
    dtype = jnp.float32

    kx, kp, kr, kp2 = jax.random.split(key, 4)
    x = jax.random.normal(kx, (batch, seq, dim), dtype=dtype)
    w1, b1, w2, b2 = init_ffn_params(kp, dim, dim_hidden, dtype)
    y_ref = _ffn_ref(x, w1, b1, w2, b2)

    # Exact f32 MXU-operand path (tight tolerance).
    params_f32 = prepare_ffn_params(w1, b1, w2, b2, compute_dtype=jnp.float32)
    y = jax.block_until_ready(ffn_pallas(x, params_f32))
    assert y.shape == x.shape
    assert jnp.allclose(y, y_ref, atol=1e-5, rtol=1e-5)

    # Default path: bf16 MXU operands with f32 accumulation (loose tolerance).
    params_bf16 = prepare_ffn_params(w1, b1, w2, b2)
    yb = jax.block_until_ready(ffn_pallas(x, params_bf16))
    assert yb.shape == x.shape and yb.dtype == x.dtype
    assert bool(jnp.all(jnp.isfinite(yb)))
    assert jnp.allclose(yb, y_ref, atol=1e-1, rtol=1e-1)

    # Multi-chunk hidden reduction (3 chunks, th=128) + ragged token count
    # (M=15, not a multiple of 8) exercising padding + accumulation paths.
    dim2, hidden2 = 64, 384
    w1b, b1b, w2b, b2b = init_ffn_params(kp2, dim2, hidden2, dtype)
    params2 = prepare_ffn_params(w1b, b1b, w2b, b2b, th=128,
                                 compute_dtype=jnp.float32)
    xr = jax.random.normal(kr, (3, 5, dim2), dtype=dtype)
    yr = jax.block_until_ready(ffn_pallas(xr, params2))
    assert jnp.allclose(yr, _ffn_ref(xr, w1b, b1b, w2b, b2b),
                        atol=1e-5, rtol=1e-5)

    print("KERNEL_OK")
</pallas_src>

<mosaic_0001>
module attributes {stable_mosaic.version = 11 : i64} {
  func.func @_ffn_kernel(%arg0: i32, %arg1: i32, %arg2: memref<16x128xf32, #tpu.memory_space<vmem>>, %arg3: memref<128x128xf32, #tpu.memory_space<vmem>>, %arg4: memref<1x128xf32, #tpu.memory_space<vmem>>, %arg5: memref<128x128xf32, #tpu.memory_space<vmem>>, %arg6: memref<1x128xf32, #tpu.memory_space<vmem>>, %arg7: memref<16x128xf32, #tpu.memory_space<vmem>>, %arg8: memref<16x128xf32, #tpu.memory_space<vmem>>) attributes {dimension_semantics = [#tpu.dimension_semantics<parallel>, #tpu.dimension_semantics<arbitrary>], iteration_bounds = array<i64: 1, 1>, scalar_prefetch = 0 : i64, scratch_operands = 1 : i64, tpu.core_type = #tpu.core_type<tc>, window_params = [{transform_indices = @transform_0, window_bounds = array<i64: 16, 128>}, {transform_indices = @transform_1, window_bounds = array<i64: 128, 128>}, {transform_indices = @transform_2, window_bounds = array<i64: 1, 128>}, {transform_indices = @transform_3, window_bounds = array<i64: 128, 128>}, {pipeline_mode = #tpu.pipeline_mode<synchronous>, transform_indices = @transform_4, window_bounds = array<i64: 1, 128>}, {transform_indices = @transform_5, window_bounds = array<i64: 16, 128>}]} {
    %c0_i32 = arith.constant 0 : i32
    %0 = arith.cmpi eq, %arg1, %c0_i32 : i32
    %1 = arith.extui %0 : i1 to i32
    %c0_i32_0 = arith.constant 0 : i32
    %2 = arith.cmpi ne, %1, %c0_i32_0 : i32
    scf.if %2 {
      %cst_16 = arith.constant 0.000000e+00 : f32
      %23 = vector.broadcast %cst_16 : f32 to vector<16x128xf32>
      %c0_17 = arith.constant 0 : index
      %c0_18 = arith.constant 0 : index
      %24 = vector.load %arg8[%c0_17, %c0_18] : memref<16x128xf32, #tpu.memory_space<vmem>>, vector<16x128xf32>
      tpu.vector_store %arg8[%c0_17, %c0_18], %23 {strides = array<i32>} : memref<16x128xf32, #tpu.memory_space<vmem>>, vector<16x128xf32>,
    } else {
    }
    %c0 = arith.constant 0 : index
    %c0_1 = arith.constant 0 : index
    %3 = vector.load %arg2[%c0, %c0_1] : memref<16x128xf32, #tpu.memory_space<vmem>>, vector<16x128xf32>
    %c0_2 = arith.constant 0 : index
    %c0_3 = arith.constant 0 : index
    %4 = vector.load %arg3[%c0_2, %c0_3] : memref<128x128xf32, #tpu.memory_space<vmem>>, vector<128x128xf32>
    %cst = arith.constant dense<0.000000e+00> : vector<16x128xf32>
    %5 = tpu.matmul %3, %4, %cst {dimension_numbers = #tpu.dot_dimension_numbers<[1], [0], [0], [1], [0, 0, 1, 1], [], []>} : vector<16x128xf32>, vector<128x128xf32>, vector<16x128xf32> -> vector<16x128xf32>
    %c0_4 = arith.constant 0 : index
    %c0_5 = arith.constant 0 : index
    %6 = vector.load %arg4[%c0_4, %c0_5] : memref<1x128xf32, #tpu.memory_space<vmem>>, vector<1x128xf32>
    %7 = vector.broadcast %6 : vector<1x128xf32> to vector<16x128xf32>
    %8 = arith.addf %5, %7 : vector<16x128xf32>
    %9 = arith.negf %8 : vector<16x128xf32>
    %10 = math.exp %9 : vector<16x128xf32>
    %cst_6 = arith.constant 1.000000e+00 : f32
    %11 = vector.broadcast %cst_6 : f32 to vector<16x128xf32>
    %12 = arith.addf %11, %10 : vector<16x128xf32>
    %13 = arith.divf %11, %12 : vector<16x128xf32>
    %14 = arith.mulf %8, %13 : vector<16x128xf32>
    %c0_7 = arith.constant 0 : index
    %c0_8 = arith.constant 0 : index
    %15 = vector.load %arg8[%c0_7, %c0_8] : memref<16x128xf32, #tpu.memory_space<vmem>>, vector<16x128xf32>
    %c0_9 = arith.constant 0 : index
    %c0_10 = arith.constant 0 : index
    %16 = vector.load %arg5[%c0_9, %c0_10] : memref<128x128xf32, #tpu.memory_space<vmem>>, vector<128x128xf32>
    %cst_11 = arith.constant dense<0.000000e+00> : vector<16x128xf32>
    %17 = tpu.matmul %14, %16, %cst_11 {dimension_numbers = #tpu.dot_dimension_numbers<[1], [0], [0], [1], [0, 0, 1, 1], [], []>} : vector<16x128xf32>, vector<128x128xf32>, vector<16x128xf32> -> vector<16x128xf32>
    %18 = arith.addf %15, %17 : vector<16x128xf32>
    %c0_12 = arith.constant 0 : index
    %c0_13 = arith.constant 0 : index
    %19 = vector.load %arg8[%c0_12, %c0_13] : memref<16x128xf32, #tpu.memory_space<vmem>>, vector<16x128xf32>
    tpu.vector_store %arg8[%c0_12, %c0_13], %18 {strides = array<i32>} : memref<16x128xf32, #tpu.memory_space<vmem>>, vector<16x128xf32>,
    %c0_i32_14 = arith.constant 0 : i32
    %20 = arith.cmpi eq, %arg1, %c0_i32_14 : i32
    %21 = arith.extui %20 : i1 to i32
    %c0_i32_15 = arith.constant 0 : i32
    %22 = arith.cmpi ne, %21, %c0_i32_15 : i32
    scf.if %22 {
      %c0_16 = arith.constant 0 : index
      %c0_17 = arith.constant 0 : index
      %23 = vector.load %arg8[%c0_16, %c0_17] : memref<16x128xf32, #tpu.memory_space<vmem>>, vector<16x128xf32>
      %c0_18 = arith.constant 0 : index
      %c0_19 = arith.constant 0 : index
      %24 = vector.load %arg6[%c0_18, %c0_19] : memref<1x128xf32, #tpu.memory_space<vmem>>, vector<1x128xf32>
      %25 = vector.broadcast %24 : vector<1x128xf32> to vector<16x128xf32>
      %26 = arith.addf %23, %25 : vector<16x128xf32>
      %c0_20 = arith.constant 0 : index
      %c0_21 = arith.constant 0 : index
      %27 = vector.load %arg7[%c0_20, %c0_21] : memref<16x128xf32, #tpu.memory_space<vmem>>, vector<16x128xf32>
      tpu.vector_store %arg7[%c0_20, %c0_21], %26 {strides = array<i32>} : memref<16x128xf32, #tpu.memory_space<vmem>>, vector<16x128xf32>,
    } else {
    }
    return
  }
  func.func @transform_0(%arg0: i32, %arg1: i32) -> (i32, i32) {
    %c0_i32 = arith.constant 0 : i32
    %c0_i32_0 = arith.constant 0 : i32
    return %arg0, %c0_i32 : i32, i32
  }
  func.func @transform_1(%arg0: i32, %arg1: i32) -> (i32, i32) {
    %c0_i32 = arith.constant 0 : i32
    %c0_i32_0 = arith.constant 0 : i32
    return %c0_i32, %arg1 : i32, i32
  }
  func.func @transform_2(%arg0: i32, %arg1: i32) -> (i32, i32) {
    %c0_i32 = arith.constant 0 : i32
    %c0_i32_0 = arith.constant 0 : i32
    return %c0_i32, %arg1 : i32, i32
  }
  func.func @transform_3(%arg0: i32, %arg1: i32) -> (i32, i32) {
    %c0_i32 = arith.constant 0 : i32
    %c0_i32_0 = arith.constant 0 : i32
    return %arg1, %c0_i32 : i32, i32
  }
  func.func @transform_4(%arg0: i32, %arg1: i32) -> (i32, i32) {
    %c0_i32 = arith.constant 0 : i32
    %c0_i32_0 = arith.constant 0 : i32
    %c0_i32_1 = arith.constant 0 : i32
    return %c0_i32, %c0_i32_0 : i32, i32
  }
  func.func @transform_5(%arg0: i32, %arg1: i32) -> (i32, i32) {
    %c0_i32 = arith.constant 0 : i32
    %c0_i32_0 = arith.constant 0 : i32
    return %arg0, %c0_i32 : i32, i32
  }
}

</mosaic_0001>

<llo_original>
// kernel: tpu_custom_call.1
$region0: #{tpu_custom_call.1}
  #allocation0 [shape = 'u32[]', space=smem, size = 0x4, offset = 0x4, fixed_abs, tag = 'smem constant byte address 0x4 - core index']
  #allocation1 [shape = 'u32[144,128]{1,0:T(1,128)}', space=vmem, size = 0x12000, scoped, tag = 'internal scratch']
  #allocation2 [shape = 'f32[16,128]{1,0:T(8,128)}', space=vmem, size = 0x2000, scoped, tag = 'scratch operand']
  %s0 = inlined_call_operand.hbm [shape: f32[16,128], index: 0, kind: input, shape index: {}]
  %s1 = inlined_call_operand.hbm [shape: f32[128,128], index: 1, kind: input, shape index: {}]
  %s2 = inlined_call_operand.vmem [shape: f32[1,128], index: 2, kind: input, shape index: {}]
  %s3 = inlined_call_operand.hbm [shape: f32[128,128], index: 3, kind: input, shape index: {}]
  %s4 = inlined_call_operand.vmem [shape: f32[1,128], index: 4, kind: input, shape index: {}]
  %s5 = inlined_call_operand.hbm [shape: f32[16,128], index: 5, kind: output, shape index: {}]
  %s6 = sld [smem:[#allocation0]]
  $region50: #{tpu_custom_call.1} parent=0
    _
  %s8 = ssub.s32 1, %s6
  %s9 = scalar_select 0, %s8, %s6
  $region1: #{tpu_custom_call.1} parent=0
    #allocation3 [shape = 'u8[8192]{0}', space=vmem, size = 0x2000, scoped, tag = 'input window, operand 0, single buffered']
    #allocation4 [shape = 's32[1]{0}', space=sflag, size = 0x4, scoped, tag = 'scoped memory for tpu_custom_call.1']
    #allocation5 [shape = 's32[1]{0}', space=sflag, size = 0x4, scoped, tag = 'scoped memory for tpu_custom_call.1']
    #allocation6 [shape = 'u8[65536]{0}', space=vmem, size = 0x10000, scoped, tag = 'input window, operand 1, single buffered']
    #allocation7 [shape = 's32[1]{0}', space=sflag, size = 0x4, scoped, tag = 'scoped memory for tpu_custom_call.1']
    #allocation8 [shape = 'u8[65536]{0}', space=vmem, size = 0x10000, scoped, tag = 'input window, operand 3, single buffered']
    #allocation9 [shape = 'u8[8192]{0}', space=vmem, size = 0x2000, scoped, tag = 'output window, operand 0, single buffered']
    %10 = vsyncpa [#allocation4], 0
    %11 = vsyncpa [#allocation7], 0
    %12 = vsyncpa [#allocation5], 0
    // Predicated region
    $region2: #{tpu_custom_call.1} parent=1 // pred_check
      _
    $region3: #{tpu_custom_call.1} parent=1 // pred_check_branch
      %14 = sbr.rel (0) target = $region5
    $region4: #{tpu_custom_call.1} parent=1 // pred_region
      %s16 = ssub.s32 256, 256
      %17 = vsyncadd [#allocation4], %s16
      %s18 = sshll.u32 [#allocation3], 4
      %s19 = int_to_ptr.vmem [resolvable:$true] %s18
      %24 = dma.hbm_to_vmem [thread:$0]  %s0, 256, %s19, [#allocation4], 128, 128, 8
    $region5: #{tpu_custom_call.1} parent=1 // pred_fallthru
      _
    // Predicated region
    $region6: #{tpu_custom_call.1} parent=1 // pred_check
      _
    $region7: #{tpu_custom_call.1} parent=1 // pred_check_branch
      %26 = sbr.rel (0) target = $region9
    $region8: #{tpu_custom_call.1} parent=1 // pred_region
      %s28 = ssub.s32 2048, 2048
      %29 = vsyncadd [#allocation7], %s28
      %s30 = sshll.u32 [#allocation6], 4
      %s31 = int_to_ptr.vmem [resolvable:$true] %s30
      %36 = dma.hbm_to_vmem [thread:$0]  %s1, 2048, %s31, [#allocation7], 128, 128, 8
    $region9: #{tpu_custom_call.1} parent=1 // pred_fallthru
      _
    // Predicated region
    $region10: #{tpu_custom_call.1} parent=1 // pred_check
      _
    $region11: #{tpu_custom_call.1} parent=1 // pred_check_branch
      %38 = sbr.rel (0) target = $region13
    $region12: #{tpu_custom_call.1} parent=1 // pred_region
      _
    $region13: #{tpu_custom_call.1} parent=1 // pred_fallthru
      _
    // Predicated region
    $region14: #{tpu_custom_call.1} parent=1 // pred_check
      _
    $region15: #{tpu_custom_call.1} parent=1 // pred_check_branch
      %40 = sbr.rel (0) target = $region17
    $region16: #{tpu_custom_call.1} parent=1 // pred_region
      %s42 = ssub.s32 2048, 2048
      %43 = vsyncadd [#allocation7], %s42
      %s44 = sshll.u32 [#allocation8], 4
      %s45 = int_to_ptr.vmem [resolvable:$true] %s44
      %50 = dma.hbm_to_vmem [thread:$0]  %s3, 2048, %s45, [#allocation7], 128, 128, 8
    $region17: #{tpu_custom_call.1} parent=1 // pred_fallthru
      _
    // Predicated region
    $region18: #{tpu_custom_call.1} parent=1 // pred_check
      _
    $region19: #{tpu_custom_call.1} parent=1 // pred_check_branch
      %52 = sbr.rel (0) target = $region21
    $region20: #{tpu_custom_call.1} parent=1 // pred_region
      _
    $region21: #{tpu_custom_call.1} parent=1 // pred_fallthru
      _
    // Predicated region
    $region22: #{tpu_custom_call.1} parent=1 // pred_check
      _
    $region23: #{tpu_custom_call.1} parent=1 // pred_check_branch
      %54 = sbr.rel (0) target = $region25
    $region24: #{tpu_custom_call.1} parent=1 // pred_region
      %55 = dma.done [#allocation4], 256
    $region25: #{tpu_custom_call.1} parent=1 // pred_fallthru
      _
    // Predicated region
    $region26: #{tpu_custom_call.1} parent=1 // pred_check
      _
    $region27: #{tpu_custom_call.1} parent=1 // pred_check_branch
      %57 = sbr.rel (0) target = $region29
    $region28: #{tpu_custom_call.1} parent=1 // pred_region
      %58 = dma.done [#allocation7], 2048
    $region29: #{tpu_custom_call.1} parent=1 // pred_fallthru
      _
    // Predicated region
    $region30: #{tpu_custom_call.1} parent=1 // pred_check
      _
    $region31: #{tpu_custom_call.1} parent=1 // pred_check_branch
      %60 = sbr.rel (0) target = $region33
    $region32: #{tpu_custom_call.1} parent=1 // pred_region
      %61 = dma.done [#allocation7], 2048
    $region33: #{tpu_custom_call.1} parent=1 // pred_fallthru
      _
    %p62 = scmp.eq.s32.totalorder 0, 0
    // Predicated region
    $region34: #{tpu_custom_call.1} parent=1 // pred_check
      %p63 = pneg %p62
    $region35: #{tpu_custom_call.1} parent=1 // pred_check_branch
      %65 = sbr.rel (%p63) target = $region37
    $region36: #{tpu_custom_call.1} parent=1 // pred_region
      %66 = vst [vmem:[#allocation2] sm:$0xff] 0.0
      %67 = vst [vmem:[#allocation2 + $0x8] sm:$0xff] 0.0
    $region37: #{tpu_custom_call.1} parent=1 // pred_fallthru
      _
    %v68 = vld [vmem:[#allocation3] sm:$0xff]
    %v69 = vld [vmem:[#allocation3 + $0x8] sm:$0xff]
    %v70 = vld [vmem:[#allocation6] sm:$0xff]
    %v71 = vld [vmem:[#allocation6 + $0x8] sm:$0xff]
    %v72 = vld [vmem:[#allocation6 + $0x10] sm:$0xff]
    %v73 = vld [vmem:[#allocation6 + $0x18] sm:$0xff]
    %v74 = vld [vmem:[#allocation6 + $0x20] sm:$0xff]
    %v75 = vld [vmem:[#allocation6 + $0x28] sm:$0xff]
    %v76 = vld [vmem:[#allocation6 + $0x30] sm:$0xff]
    %v77 = vld [vmem:[#allocation6 + $0x38] sm:$0xff]
    %v78 = vld [vmem:[#allocation6 + $0x40] sm:$0xff]
    %v79 = vld [vmem:[#allocation6 + $0x48] sm:$0xff]
    %v80 = vld [vmem:[#allocation6 + $0x50] sm:$0xff]
    %v81 = vld [vmem:[#allocation6 + $0x58] sm:$0xff]
    %v82 = vld [vmem:[#allocation6 + $0x60] sm:$0xff]
    %v83 = vld [vmem:[#allocation6 + $0x68] sm:$0xff]
    %v84 = vld [vmem:[#allocation6 + $0x70] sm:$0xff]
    %v85 = vld [vmem:[#allocation6 + $0x78] sm:$0xff]
    %v86 = vld [vmem:[%s2] sm:$0x1]
    %v88 = vlaneseq
    %v89 = vshrl.u32 %v88, 7
    %v90 = vsub.s32 0, %v89
    %v91 = vrot.slane %v86, %v90
    %93 = vmatprep.subr.mxu0 0.0
    %94 = vmatpush1.msra.mxu0 %v70
    %95 = vmatprep.subr.mxu0 0.0
    %96 = vmatpush1.msra.mxu0 %v71
    %97 = vmatprep.subr.mxu0 0.0
    %98 = vmatpush1.msra.mxu0 %v72
    %99 = vmatprep.subr.mxu0 0.0
    %100 = vmatpush1.msra.mxu0 %v73
    %101 = vmatprep.subr.mxu0 0.0
    %102 = vmatpush1.msra.mxu0 %v74
    %103 = vmatprep.subr.mxu0 0.0
    %104 = vmatpush1.msra.mxu0 %v75
    %105 = vmatprep.subr.mxu0 0.0
    %106 = vmatpush1.msra.mxu0 %v76
    %107 = vmatprep.subr.mxu0 0.0
    %108 = vmatpush1.msra.mxu0 %v77
    %109 = vmatprep.subr.mxu0 0.0
    %110 = vmatpush1.msra.mxu0 %v78
    %111 = vmatprep.subr.mxu0 0.0
    %112 = vmatpush1.msra.mxu0 %v79
    %113 = vmatprep.subr.mxu0 0.0
    %114 = vmatpush1.msra.mxu0 %v80
    %115 = vmatprep.subr.mxu0 0.0
    %116 = vmatpush1.msra.mxu0 %v81
    %117 = vmatprep.subr.mxu0 0.0
    %118 = vmatpush1.msra.mxu0 %v82
    %119 = vmatprep.subr.mxu0 0.0
    %120 = vmatpush1.msra.mxu0 %v83
    %121 = vmatprep.subr.mxu0 0.0
    %122 = vmatpush1.msra.mxu0 %v84
    %123 = vmatprep.subr.mxu0 0.0
    %124 = vmatpush1.msra.mxu0 %v85
    %125 = vmatprep.subr.mxu0 0.0
    %126 = vmatpush1.msra.mxu0 0.0
    %127 = vmatprep.subr.mxu0 0.0
    %128 = vmatpush1.msra.mxu0 0.0
    %129 = vmatprep.subr.mxu0 0.0
    %130 = vmatpush1.msra.mxu0 0.0
    %131 = vmatprep.subr.mxu0 0.0
    %132 = vmatpush1.msra.mxu0 0.0
    %133 = vmatprep.subr.mxu0 0.0
    %134 = vmatpush1.msra.mxu0 0.0
    %135 = vmatprep.subr.mxu0 0.0
    %136 = vmatpush1.msra.mxu0 0.0
    %137 = vmatprep.subr.mxu0 0.0
    %138 = vmatpush1.msra.mxu0 0.0
    %139 = vmatprep.subr.mxu0 0.0
    %140 = vmatpush1.msra.mxu0 0.0
    %141 = vmatprep.subr.mxu0 0.0
    %142 = vmatpush1.msra.mxu0 0.0
    %143 = vmatprep.subr.mxu0 0.0
    %144 = vmatpush1.msra.mxu0 0.0
    %145 = vmatprep.subr.mxu0 0.0
    %146 = vmatpush1.msra.mxu0 0.0
    %147 = vmatprep.subr.mxu0 0.0
    %148 = vmatpush1.msra.mxu0 0.0
    %149 = vmatprep.subr.mxu0 0.0
    %150 = vmatpush1.msra.mxu0 0.0
    %151 = vmatprep.subr.mxu0 0.0
    %152 = vmatpush1.msra.mxu0 0.0
    %153 = vmatprep.subr.mxu0 0.0
    %154 = vmatpush1.msra.mxu0 0.0
    %155 = vmatprep.subr.mxu0 0.0
    %156 = vmatpush1.msra.mxu0 0.0
    %157 = vmatprep.mubr.f32.mxu0 0.0
    %158 = vmatmul.mubr.f32.gmra.mrb[0].mxu0 %v68
    %v159 = vpop.f32.mrb[0].mxu0
    %v160 = vadd.f32 %v91, %v159
    %v161 = vpop.f32.mrb[0].mxu0
    %162 = vmatprep.mubr.f32.mxu0 0.0
    %163 = vmatmul.mubr.f32.gmra.mrb[0].mxu0 %v69
    %v164 = vpop.f32.mrb[0].mxu0
    %v165 = vadd.f32 %v91, %v164
    %v166 = vpop.f32.mrb[0].mxu0
    %167 = vdwg.mxu0
    %v168 = vxor.u32 %v160, 2147483648
    %v169 = vxor.u32 %v165, 2147483648
    %v170 = vmul.f32 %v168, 1.442695
    %v171 = vpow.pop %v170
    %v172 = vmul.f32 %v169, 1.442695
    %v173 = vpow.pop %v172
    %v174 = vadd.f32 %v171, 1.0
    %v175 = vadd.f32 %v173, 1.0
    %v176 = vrcp.pop %v174
    %v177 = vmul.f32 1.0, %v176
    %v178 = vrcp.pop %v175
    %v179 = vmul.f32 1.0, %v178
    %v180 = vmul.f32 %v160, %v177
    %v181 = vmul.f32 %v165, %v179
    %v182 = vld [vmem:[#allocation2] sm:$0xff]
    %v183 = vld [vmem:[#allocation2 + $0x8] sm:$0xff]
    %v184 = vld [vmem:[#allocation8] sm:$0xff]
    %v185 = vld [vmem:[#allocation8 + $0x8] sm:$0xff]
    %v186 = vld [vmem:[#allocation8 + $0x10] sm:$0xff]
    %v187 = vld [vmem:[#allocation8 + $0x18] sm:$0xff]
    %v188 = vld [vmem:[#allocation8 + $0x20] sm:$0xff]
    %v189 = vld [vmem:[#allocation8 + $0x28] sm:$0xff]
    %v190 = vld [vmem:[#allocation8 + $0x30] sm:$0xff]
    %v191 = vld [vmem:[#allocation8 + $0x38] sm:$0xff]
    %v192 = vld [vmem:[#allocation8 + $0x40] sm:$0xff]
    %v193 = vld [vmem:[#allocation8 + $0x48] sm:$0xff]
    %v194 = vld [vmem:[#allocation8 + $0x50] sm:$0xff]
    %v195 = vld [vmem:[#allocation8 + $0x58] sm:$0xff]
    %v196 = vld [vmem:[#allocation8 + $0x60] sm:$0xff]
    %v197 = vld [vmem:[#allocation8 + $0x68] sm:$0xff]
    %v198 = vld [vmem:[#allocation8 + $0x70] sm:$0xff]
    %v199 = vld [vmem:[#allocation8 + $0x78] sm:$0xff]
    %200 = vmatprep.subr.mxu0 0.0
    %201 = vmatpush1.msra.mxu0 %v184
    %202 = vmatprep.subr.mxu0 0.0
    %203 = vmatpush1.msra.mxu0 %v185
    %204 = vmatprep.subr.mxu0 0.0
    %205 = vmatpush1.msra.mxu0 %v186
    %206 = vmatprep.subr.mxu0 0.0
    %207 = vmatpush1.msra.mxu0 %v187
    %208 = vmatprep.subr.mxu0 0.0
    %209 = vmatpush1.msra.mxu0 %v188
    %210 = vmatprep.subr.mxu0 0.0
    %211 = vmatpush1.msra.mxu0 %v189
    %212 = vmatprep.subr.mxu0 0.0
    %213 = vmatpush1.msra.mxu0 %v190
    %214 = vmatprep.subr.mxu0 0.0
    %215 = vmatpush1.msra.mxu0 %v191
    %216 = vmatprep.subr.mxu0 0.0
    %217 = vmatpush1.msra.mxu0 %v192
    %218 = vmatprep.subr.mxu0 0.0
    %219 = vmatpush1.msra.mxu0 %v193
    %220 = vmatprep.subr.mxu0 0.0
    %221 = vmatpush1.msra.mxu0 %v194
    %222 = vmatprep.subr.mxu0 0.0
    %223 = vmatpush1.msra.mxu0 %v195
    %224 = vmatprep.subr.mxu0 0.0
    %225 = vmatpush1.msra.mxu0 %v196
    %226 = vmatprep.subr.mxu0 0.0
    %227 = vmatpush1.msra.mxu0 %v197
    %228 = vmatprep.subr.mxu0 0.0
    %229 = vmatpush1.msra.mxu0 %v198
    %230 = vmatprep.subr.mxu0 0.0
    %231 = vmatpush1.msra.mxu0 %v199
    %232 = vmatprep.subr.mxu0 0.0
    %233 = vmatpush1.msra.mxu0 0.0
    %234 = vmatprep.subr.mxu0 0.0
    %235 = vmatpush1.msra.mxu0 0.0
    %236 = vmatprep.subr.mxu0 0.0
    %237 = vmatpush1.msra.mxu0 0.0
    %238 = vmatprep.subr.mxu0 0.0
    %239 = vmatpush1.msra.mxu0 0.0
    %240 = vmatprep.subr.mxu0 0.0
    %241 = vmatpush1.msra.mxu0 0.0
    %242 = vmatprep.subr.mxu0 0.0
    %243 = vmatpush1.msra.mxu0 0.0
    %244 = vmatprep.subr.mxu0 0.0
    %245 = vmatpush1.msra.mxu0 0.0
    %246 = vmatprep.subr.mxu0 0.0
    %247 = vmatpush1.msra.mxu0 0.0
    %248 = vmatprep.subr.mxu0 0.0
    %249 = vmatpush1.msra.mxu0 0.0
    %250 = vmatprep.subr.mxu0 0.0
    %251 = vmatpush1.msra.mxu0 0.0
    %252 = vmatprep.subr.mxu0 0.0
    %253 = vmatpush1.msra.mxu0 0.0
    %254 = vmatprep.subr.mxu0 0.0
    %255 = vmatpush1.msra.mxu0 0.0
    %256 = vmatprep.subr.mxu0 0.0
    %257 = vmatpush1.msra.mxu0 0.0
    %258 = vmatprep.subr.mxu0 0.0
    %259 = vmatpush1.msra.mxu0 0.0
    %260 = vmatprep.subr.mxu0 0.0
    %261 = vmatpush1.msra.mxu0 0.0
    %262 = vmatprep.subr.mxu0 0.0
    %263 = vmatpush1.msra.mxu0 0.0
    %264 = vmatprep.mubr.f32.mxu0 0.0
    %265 = vmatmul.mubr.f32.gmra.mrb[0].mxu0 %v180
    %v266 = vpop.f32.mrb[0].mxu0
    %v267 = vadd.f32 0.0, %v266
    %v268 = vpop.f32.mrb[0].mxu0
    %269 = vmatprep.mubr.f32.mxu0 0.0
    %270 = vmatmul.mubr.f32.gmra.mrb[0].mxu0 %v181
    %v271 = vpop.f32.mrb[0].mxu0
    %v272 = vadd.f32 0.0, %v271
    %v273 = vpop.f32.mrb[0].mxu0
    %274 = vdwg.mxu0
    %v275 = vadd.f32 %v182, %v267
    %v276 = vadd.f32 %v183, %v272
    %277 = vst [vmem:[#allocation2] sm:$0xff] %v275
    %278 = vst [vmem:[#allocation2 + $0x8] sm:$0xff] %v276
    // Predicated region
    $region38: #{tpu_custom_call.1} parent=1 // pred_check
      %p279 = pneg %p62
    $region39: #{tpu_custom_call.1} parent=1 // pred_check_branch
      %281 = sbr.rel (%p279) target = $region41
    $region40: #{tpu_custom_call.1} parent=1 // pred_region
      %v282 = vld [vmem:[#allocation2] sm:$0xff]
      %v283 = vld [vmem:[#allocation2 + $0x8] sm:$0xff]
      %v284 = vld [vmem:[%s4] sm:$0x1]
      %v286 = vlaneseq
      %v287 = vshrl.u32 %v286, 7
      %v288 = vsub.s32 0, %v287
      %v289 = vrot.slane %v284, %v288
      %v291 = vadd.f32 %v282, %v289
      %v292 = vadd.f32 %v283, %v289
      %293 = vst [vmem:[#allocation9] sm:$0xff] %v291
      %294 = vst [vmem:[#allocation9 + $0x8] sm:$0xff] %v292
    $region41: #{tpu_custom_call.1} parent=1 // pred_fallthru
      _
    // Predicated region
    $region42: #{tpu_custom_call.1} parent=1 // pred_check
      _
    $region43: #{tpu_custom_call.1} parent=1 // pred_check_branch
      %296 = sbr.rel (0) target = $region45
    $region44: #{tpu_custom_call.1} parent=1 // pred_region
      %s298 = ssub.s32 256, 256
      %299 = vsyncadd [#allocation5], %s298
      %s300 = sshll.u32 [#allocation9], 4
      %s301 = int_to_ptr.vmem [resolvable:$true] %s300
      %306 = dma.vmem_to_hbm [thread:$0]  %s301, 256, %s5, [#allocation5], 128, 128, 8
    $region45: #{tpu_custom_call.1} parent=1 // pred_fallthru
      _
    // Predicated region
    $region46: #{tpu_custom_call.1} parent=1 // pred_check
      _
    $region47: #{tpu_custom_call.1} parent=1 // pred_check_branch
      %308 = sbr.rel (0) target = $region49
    $region48: #{tpu_custom_call.1} parent=1 // pred_region
      %309 = dma.done [#allocation5], 256
    $region49: #{tpu_custom_call.1} parent=1 // pred_fallthru
      _
    %310 = vsyncpa [#allocation4], 1
    %311 = vsyncpa [#allocation7], 1
    %312 = vsyncpa [#allocation5], 1

</llo_original>
